<compile_context>
chip_gen: v7x
topology: tpu7x:2x2x1
jax: 0.10.0
libtpu: 0.0.40
codegen_flags: <defaults>
</compile_context>

<pallas_src>
import jax
import jax.numpy as jnp
from jax.experimental import pallas as pl
from jax.experimental.pallas import tpu as pltpu


def acer_kernel(x_ref, w1_ref, b1_ref, wl_ref, bl_ref, wh_ref, bh_ref,
                h0_ref, c0_ref, out_ref):
    H = h0_ref.shape[1]
    A = bh_ref.shape[1] // 2

    # fc1 + ReLU (bf16 MXU operands, f32 accumulate)
    x = x_ref[...].astype(jnp.bfloat16)
    h1 = jnp.dot(x, w1_ref[...], preferred_element_type=jnp.float32) + b1_ref[...]
    h1 = jnp.maximum(h1, 0.0)

    # fused LSTMCell: single matmul of [h1 | h0] @ [Wih ; Whh] + (bih + bhh)
    hcat = jnp.concatenate([h1, h0_ref[...]], axis=-1).astype(jnp.bfloat16)
    gates = jnp.dot(hcat, wl_ref[...], preferred_element_type=jnp.float32) + bl_ref[...]

    # nonlinearities on the full (tm, 4H) block, then lane-select i/f/g/o
    sig = 1.0 / (1.0 + jnp.exp(-gates))
    tnh = jnp.tanh(gates)
    i_g = sig[:, 0:H]
    f_g = sig[:, H:2 * H]
    g_g = tnh[:, 2 * H:3 * H]
    o_g = sig[:, 3 * H:4 * H]
    c_new = f_g * c0_ref[...] + i_g * g_g
    h_new = o_g * jnp.tanh(c_new)

    # fused actor/critic heads: one matmul, then slice logits / q
    heads = jnp.dot(h_new.astype(jnp.bfloat16), wh_ref[...],
                    preferred_element_type=jnp.float32) + bh_ref[...]
    logits = heads[:, 0:A]
    q = heads[:, A:2 * A]

    # softmax(dim=1) -> clamp (matches PyTorch: clamp applied before v)
    m = jnp.max(logits, axis=-1, keepdims=True)
    e = jnp.exp(logits - m)
    policy = e * pl.reciprocal(jnp.sum(e, axis=-1, keepdims=True), approx=True)
    policy = jnp.clip(policy, 1e-6, 1.0 - 1e-6)

    v = jnp.sum(q * policy, axis=-1, keepdims=True)

    # single lane-dense store: [policy | q | v | h | c | zero-pad]
    used = 2 * A + 1 + 2 * H
    pad = out_ref.shape[1] - used
    pieces = [policy, q, v, h_new, c_new]
    if pad:
        pieces.append(jnp.zeros((policy.shape[0], pad), jnp.float32))
    out_ref[...] = jnp.concatenate(pieces, axis=-1)


def fuse_params(raw_params):
    """One-time fusion + bf16 cast of the MXU-side weights."""
    w1, b1, wih, whh, bih, bhh, wa, ba, wc, bc = raw_params
    w1b = w1.astype(jnp.bfloat16)                                 # (in, H)
    wl = jnp.concatenate([wih, whh], axis=0).astype(jnp.bfloat16)  # (2H, 4H)
    bl = (bih + bhh).astype(jnp.float32)                           # (1, 4H)
    wh = jnp.concatenate([wa, wc], axis=1).astype(jnp.bfloat16)    # (H, 2A)
    bh = jnp.concatenate([ba, bc], axis=1).astype(jnp.float32)     # (1, 2A)
    return (w1b, b1.astype(jnp.float32), wl, bl, wh, bh)


def acer_mlp_dis_forward(x, fused_params, lstm_hidden):
    """x: (B, hist_len, state_shape); lstm_hidden: (h0, c0) each (B, H)."""
    B = x.shape[0]
    x2d = x.reshape(B, -1).astype(jnp.float32)
    h0, c0 = lstm_hidden
    h0 = h0.astype(jnp.float32)
    c0 = c0.astype(jnp.float32)
    w1, b1, wl, bl, wh, bh = fused_params
    in_dim = x2d.shape[1]
    H = h0.shape[1]
    A = bh.shape[1] // 2

    # pad batch to the sublane grain; pick a batch tile (parallel axis for v7x)
    if B <= 256:
        tm = max(8, ((B + 7) // 8) * 8)
        B_pad = tm
    else:
        tm = 256
        B_pad = ((B + tm - 1) // tm) * tm
    pad_rows = B_pad - B
    if pad_rows:
        x2d = jnp.pad(x2d, ((0, pad_rows), (0, 0)))
        h0p = jnp.pad(h0, ((0, pad_rows), (0, 0)))
        c0p = jnp.pad(c0, ((0, pad_rows), (0, 0)))
    else:
        h0p, c0p = h0, c0

    used_w = 2 * A + 1 + 2 * H
    out_w = ((used_w + 127) // 128) * 128   # lane-dense output slab width

    row_map = lambda i: (i, 0)
    const_map = lambda i: (0, 0)            # weights stay VMEM-resident across grid

    in_specs = [
        pl.BlockSpec((tm, in_dim), row_map),
        pl.BlockSpec(w1.shape, const_map),
        pl.BlockSpec(b1.shape, const_map),
        pl.BlockSpec(wl.shape, const_map),
        pl.BlockSpec(bl.shape, const_map),
        pl.BlockSpec(wh.shape, const_map),
        pl.BlockSpec(bh.shape, const_map),
        pl.BlockSpec((tm, H), row_map),
        pl.BlockSpec((tm, H), row_map),
    ]
    out_spec = pl.BlockSpec((tm, out_w), row_map)

    slab = pl.pallas_call(
        acer_kernel,
        out_shape=jax.ShapeDtypeStruct((B_pad, out_w), jnp.float32),
        grid=(B_pad // tm,),
        in_specs=in_specs,
        out_specs=out_spec,
        compiler_params=pltpu.CompilerParams(dimension_semantics=("parallel",)),
    )(x2d, w1, b1, wl, bl, wh, bh, h0p, c0p)

    policy = slab[:B, 0:A]
    q = slab[:B, A:2 * A]
    v = slab[:B, 2 * A:2 * A + 1]
    h = slab[:B, 2 * A + 1:2 * A + 1 + H]
    c = slab[:B, 2 * A + 1 + H:2 * A + 1 + 2 * H]
    return policy, q, v, (h, c)


def init_params(key, in_dim, hidden_dim, action_dim):
    """Deterministic init mirroring the PyTorch module's _init_weights."""
    ks = jax.random.split(key, 8)

    # fc1: uniform(-w_bound, w_bound), w_bound = sqrt(6/(fan_in+fan_out)); bias 0
    wb1 = (6.0 / (in_dim + hidden_dim)) ** 0.5
    w1 = jax.random.uniform(ks[0], (in_dim, hidden_dim), jnp.float32, -wb1, wb1)
    b1 = jnp.zeros((1, hidden_dim), jnp.float32)

    # LSTMCell weights: uniform(-1/sqrt(H), 1/sqrt(H)); biases filled 0
    lb = 1.0 / (hidden_dim ** 0.5)
    wih = jax.random.uniform(ks[1], (hidden_dim, 4 * hidden_dim), jnp.float32, -lb, lb)
    whh = jax.random.uniform(ks[2], (hidden_dim, 4 * hidden_dim), jnp.float32, -lb, lb)
    bih = jnp.zeros((1, 4 * hidden_dim), jnp.float32)
    bhh = jnp.zeros((1, 4 * hidden_dim), jnp.float32)

    # actor_2 / critic_2: normalized_columns_initializer (row-normalized randn * std)
    def norm_cols(k, out_dim, in_d, std):
        w = jax.random.normal(k, (out_dim, in_d), jnp.float32)
        w = w * std / jnp.sqrt(jnp.sum(w ** 2, axis=1, keepdims=True))
        return w.T  # store as (in, out)

    wa = norm_cols(ks[3], action_dim, hidden_dim, 0.01)
    ba = jnp.zeros((1, action_dim), jnp.float32)
    wc = norm_cols(ks[4], action_dim, hidden_dim, 1.0)
    bc = jnp.zeros((1, action_dim), jnp.float32)

    return (w1, b1, wih, whh, bih, bhh, wa, ba, wc, bc)


def reference_forward(x, raw_params, lstm_hidden):
    """Pure-JAX f32 reference of the PyTorch forward (for tolerance check)."""
    w1, b1, wih, whh, bih, bhh, wa, ba, wc, bc = raw_params
    h0, c0 = lstm_hidden
    B = x.shape[0]
    x2d = x.reshape(B, -1)
    h1 = jnp.maximum(x2d @ w1 + b1, 0.0)
    gates = h1 @ wih + bih + h0 @ whh + bhh
    H = h0.shape[1]
    i = jax.nn.sigmoid(gates[:, :H])
    f = jax.nn.sigmoid(gates[:, H:2 * H])
    g = jnp.tanh(gates[:, 2 * H:3 * H])
    o = jax.nn.sigmoid(gates[:, 3 * H:])
    c = f * c0 + i * g
    h = o * jnp.tanh(c)
    logits = h @ wa + ba
    policy = jnp.clip(jax.nn.softmax(logits, axis=-1), 1e-6, 1.0 - 1e-6)
    q = h @ wc + bc
    v = jnp.sum(q * policy, axis=-1, keepdims=True)
    return policy, q, v, (h, c)


if __name__ == "__main__":
    # Small shapes consistent with the module: hist_len=4, state_shape=4 -> in_dim=16
    B, hist_len, state_shape = 2, 4, 4
    hidden_dim, action_dim = 32, 6
    in_dim = hist_len * state_shape

    key = jax.random.PRNGKey(0)
    k_x, k_h, k_c, k_p = jax.random.split(key, 4)
    x = jax.random.normal(k_x, (B, hist_len, state_shape), jnp.float32)
    h0 = jax.random.normal(k_h, (B, hidden_dim), jnp.float32)
    c0 = jax.random.normal(k_c, (B, hidden_dim), jnp.float32)
    raw_params = init_params(k_p, in_dim, hidden_dim, action_dim)
    params = fuse_params(raw_params)

    policy, q, v, (h, c) = acer_mlp_dis_forward(x, params, (h0, c0))
    jax.block_until_ready((policy, q, v, h, c))

    # Sanity: shapes match the PyTorch forward, softmax rows ~ 1.
    assert policy.shape == (B, action_dim)
    assert q.shape == (B, action_dim)
    assert v.shape == (B, 1)
    assert h.shape == (B, hidden_dim) and c.shape == (B, hidden_dim)
    assert bool(jnp.all(jnp.abs(jnp.sum(policy, axis=1) - 1.0) < 1e-2))

    # Numerical check vs. f32 reference (bf16 MXU + approx recip -> loose tol).
    rp, rq, rv, (rh, rc) = reference_forward(x, raw_params, (h0, c0))
    assert bool(jnp.allclose(policy, rp, atol=5e-2, rtol=5e-2))
    assert bool(jnp.allclose(q, rq, atol=5e-2, rtol=5e-2))
    assert bool(jnp.allclose(v, rv, atol=5e-2, rtol=5e-2))
    assert bool(jnp.allclose(h, rh, atol=5e-2, rtol=5e-2))
    assert bool(jnp.allclose(c, rc, atol=5e-2, rtol=5e-2))

    print("KERNEL_OK")
</pallas_src>

<mosaic_0001>
module attributes {stable_mosaic.version = 11 : i64} {
  func.func @acer_kernel(%arg0: i32, %arg1: memref<8x16xf32, #tpu.memory_space<vmem>>, %arg2: memref<16x32xbf16, #tpu.memory_space<vmem>>, %arg3: memref<1x32xf32, #tpu.memory_space<vmem>>, %arg4: memref<64x128xbf16, #tpu.memory_space<vmem>>, %arg5: memref<1x128xf32, #tpu.memory_space<vmem>>, %arg6: memref<32x12xbf16, #tpu.memory_space<vmem>>, %arg7: memref<1x12xf32, #tpu.memory_space<vmem>>, %arg8: memref<8x32xf32, #tpu.memory_space<vmem>>, %arg9: memref<8x32xf32, #tpu.memory_space<vmem>>, %arg10: memref<8x128xf32, #tpu.memory_space<vmem>>) attributes {dimension_semantics = [#tpu.dimension_semantics<parallel>], iteration_bounds = array<i64: 1>, scalar_prefetch = 0 : i64, scratch_operands = 0 : i64, tpu.core_type = #tpu.core_type<tc>, window_params = [{transform_indices = @transform_0, window_bounds = array<i64: 8, 16>}, {pipeline_mode = #tpu.pipeline_mode<synchronous>, transform_indices = @transform_1, window_bounds = array<i64: 16, 32>}, {pipeline_mode = #tpu.pipeline_mode<synchronous>, transform_indices = @transform_2, window_bounds = array<i64: 1, 32>}, {pipeline_mode = #tpu.pipeline_mode<synchronous>, transform_indices = @transform_3, window_bounds = array<i64: 64, 128>}, {pipeline_mode = #tpu.pipeline_mode<synchronous>, transform_indices = @transform_4, window_bounds = array<i64: 1, 128>}, {pipeline_mode = #tpu.pipeline_mode<synchronous>, transform_indices = @transform_5, window_bounds = array<i64: 32, 12>}, {pipeline_mode = #tpu.pipeline_mode<synchronous>, transform_indices = @transform_6, window_bounds = array<i64: 1, 12>}, {transform_indices = @transform_7, window_bounds = array<i64: 8, 32>}, {transform_indices = @transform_8, window_bounds = array<i64: 8, 32>}, {transform_indices = @transform_9, window_bounds = array<i64: 8, 128>}]} {
    %c0 = arith.constant 0 : index
    %c0_0 = arith.constant 0 : index
    %0 = vector.load %arg1[%c0, %c0_0] : memref<8x16xf32, #tpu.memory_space<vmem>>, vector<8x16xf32>
    %1 = arith.truncf %0 : vector<8x16xf32> to vector<8x16xbf16>
    %c0_1 = arith.constant 0 : index
    %c0_2 = arith.constant 0 : index
    %2 = vector.load %arg2[%c0_1, %c0_2] : memref<16x32xbf16, #tpu.memory_space<vmem>>, vector<16x32xbf16>
    %cst = arith.constant dense<0.000000e+00> : vector<8x32xf32>
    %3 = tpu.matmul %1, %2, %cst {dimension_numbers = #tpu.dot_dimension_numbers<[1], [0], [0], [1], [0, 0, 1, 1], [], []>} : vector<8x16xbf16>, vector<16x32xbf16>, vector<8x32xf32> -> vector<8x32xf32>
    %c0_3 = arith.constant 0 : index
    %c0_4 = arith.constant 0 : index
    %4 = vector.load %arg3[%c0_3, %c0_4] : memref<1x32xf32, #tpu.memory_space<vmem>>, vector<1x32xf32>
    %5 = vector.broadcast %4 : vector<1x32xf32> to vector<8x32xf32>
    %6 = arith.addf %3, %5 : vector<8x32xf32>
    %cst_5 = arith.constant 0.000000e+00 : f32
    %7 = vector.broadcast %cst_5 : f32 to vector<8x32xf32>
    %8 = arith.maximumf %6, %7 : vector<8x32xf32>
    %c0_6 = arith.constant 0 : index
    %c0_7 = arith.constant 0 : index
    %9 = vector.load %arg8[%c0_6, %c0_7] : memref<8x32xf32, #tpu.memory_space<vmem>>, vector<8x32xf32>
    %10 = tpu.concatenate %8, %9 in 1 : vector<8x32xf32>, vector<8x32xf32> -> vector<8x64xf32>
    %11 = arith.truncf %10 : vector<8x64xf32> to vector<8x64xbf16>
    %c0_8 = arith.constant 0 : index
    %c0_9 = arith.constant 0 : index
    %12 = vector.load %arg4[%c0_8, %c0_9] : memref<64x128xbf16, #tpu.memory_space<vmem>>, vector<64x128xbf16>
    %cst_10 = arith.constant dense<0.000000e+00> : vector<8x128xf32>
    %13 = tpu.matmul %11, %12, %cst_10 {dimension_numbers = #tpu.dot_dimension_numbers<[1], [0], [0], [1], [0, 0, 1, 1], [], []>} : vector<8x64xbf16>, vector<64x128xbf16>, vector<8x128xf32> -> vector<8x128xf32>
    %c0_11 = arith.constant 0 : index
    %c0_12 = arith.constant 0 : index
    %14 = vector.load %arg5[%c0_11, %c0_12] : memref<1x128xf32, #tpu.memory_space<vmem>>, vector<1x128xf32>
    %15 = vector.broadcast %14 : vector<1x128xf32> to vector<8x128xf32>
    %16 = arith.addf %13, %15 : vector<8x128xf32>
    %cst_13 = arith.constant 0.000000e+00 : f32
    %17 = vector.broadcast %cst_13 : f32 to vector<8x128xf32>
    %18 = arith.subf %17, %16 : vector<8x128xf32>
    %19 = math.exp %18 : vector<8x128xf32>
    %cst_14 = arith.constant 1.000000e+00 : f32
    %20 = vector.broadcast %cst_14 : f32 to vector<8x128xf32>
    %21 = arith.addf %20, %19 : vector<8x128xf32>
    %cst_15 = arith.constant 1.000000e+00 : f32
    %22 = vector.broadcast %cst_15 : f32 to vector<8x128xf32>
    %23 = arith.divf %22, %21 : vector<8x128xf32>
    %24 = math.tanh %16 : vector<8x128xf32>
    %25 = vector.extract_strided_slice %23 {offsets = [0, 0], sizes = [8, 32], strides = [1, 1]} : vector<8x128xf32> to vector<8x32xf32>
    %26 = vector.extract_strided_slice %23 {offsets = [0, 32], sizes = [8, 32], strides = [1, 1]} : vector<8x128xf32> to vector<8x32xf32>
    %27 = vector.extract_strided_slice %24 {offsets = [0, 64], sizes = [8, 32], strides = [1, 1]} : vector<8x128xf32> to vector<8x32xf32>
    %28 = vector.extract_strided_slice %23 {offsets = [0, 96], sizes = [8, 32], strides = [1, 1]} : vector<8x128xf32> to vector<8x32xf32>
    %c0_16 = arith.constant 0 : index
    %c0_17 = arith.constant 0 : index
    %29 = vector.load %arg9[%c0_16, %c0_17] : memref<8x32xf32, #tpu.memory_space<vmem>>, vector<8x32xf32>
    %30 = arith.mulf %26, %29 : vector<8x32xf32>
    %31 = arith.mulf %25, %27 : vector<8x32xf32>
    %32 = arith.addf %30, %31 : vector<8x32xf32>
    %33 = math.tanh %32 : vector<8x32xf32>
    %34 = arith.mulf %28, %33 : vector<8x32xf32>
    %35 = arith.truncf %34 : vector<8x32xf32> to vector<8x32xbf16>
    %c0_18 = arith.constant 0 : index
    %c0_19 = arith.constant 0 : index
    %36 = vector.load %arg6[%c0_18, %c0_19] : memref<32x12xbf16, #tpu.memory_space<vmem>>, vector<32x12xbf16>
    %cst_20 = arith.constant dense<0.000000e+00> : vector<8x12xf32>
    %37 = tpu.matmul %35, %36, %cst_20 {dimension_numbers = #tpu.dot_dimension_numbers<[1], [0], [0], [1], [0, 0, 1, 1], [], []>} : vector<8x32xbf16>, vector<32x12xbf16>, vector<8x12xf32> -> vector<8x12xf32>
    %c0_21 = arith.constant 0 : index
    %c0_22 = arith.constant 0 : index
    %38 = vector.load %arg7[%c0_21, %c0_22] : memref<1x12xf32, #tpu.memory_space<vmem>>, vector<1x12xf32>
    %39 = vector.broadcast %38 : vector<1x12xf32> to vector<8x12xf32>
    %40 = arith.addf %37, %39 : vector<8x12xf32>
    %41 = vector.extract_strided_slice %40 {offsets = [0, 0], sizes = [8, 6], strides = [1, 1]} : vector<8x12xf32> to vector<8x6xf32>
    %42 = vector.extract_strided_slice %40 {offsets = [0, 6], sizes = [8, 6], strides = [1, 1]} : vector<8x12xf32> to vector<8x6xf32>
    %cst_23 = arith.constant dense<0xFF800000> : vector<8xf32>
    %43 = vector.multi_reduction <maximumf>, %41, %cst_23 [1] : vector<8x6xf32> to vector<8xf32>
    %44 = vector.shape_cast %43 : vector<8xf32> to vector<8x1xf32>
    %45 = vector.broadcast %44 : vector<8x1xf32> to vector<8x6xf32>
    %46 = arith.subf %41, %45 : vector<8x6xf32>
    %47 = math.exp %46 : vector<8x6xf32>
    %cst_24 = arith.constant dense<0.000000e+00> : vector<8xf32>
    %48 = vector.multi_reduction <add>, %47, %cst_24 [1] : vector<8x6xf32> to vector<8xf32>
    %49 = vector.shape_cast %48 : vector<8xf32> to vector<8x1xf32>
    %50 = tpu.reciprocal %49 {approx = true} : vector<8x1xf32> -> vector<8x1xf32>
    %51 = vector.broadcast %50 : vector<8x1xf32> to vector<8x6xf32>
    %52 = arith.mulf %47, %51 : vector<8x6xf32>
    %cst_25 = arith.constant 9.99999997E-7 : f32
    %cst_26 = arith.constant 0.999998986 : f32
    %53 = vector.broadcast %cst_25 : f32 to vector<8x6xf32>
    %54 = arith.maximumf %53, %52 : vector<8x6xf32>
    %55 = vector.broadcast %cst_26 : f32 to vector<8x6xf32>
    %56 = arith.minimumf %55, %54 : vector<8x6xf32>
    %57 = arith.mulf %42, %56 : vector<8x6xf32>
    %cst_27 = arith.constant dense<0.000000e+00> : vector<8xf32>
    %58 = vector.multi_reduction <add>, %57, %cst_27 [1] : vector<8x6xf32> to vector<8xf32>
    %59 = vector.shape_cast %58 : vector<8xf32> to vector<8x1xf32>
    %cst_28 = arith.constant 0.000000e+00 : f32
    %60 = vector.broadcast %cst_28 : f32 to vector<8x51xf32>
    %61 = tpu.concatenate %56, %42, %59, %34, %32, %60 in 1 : vector<8x6xf32>, vector<8x6xf32>, vector<8x1xf32>, vector<8x32xf32>, vector<8x32xf32>, vector<8x51xf32> -> vector<8x128xf32>
    %c0_29 = arith.constant 0 : index
    %c0_30 = arith.constant 0 : index
    %62 = vector.load %arg10[%c0_29, %c0_30] : memref<8x128xf32, #tpu.memory_space<vmem>>, vector<8x128xf32>
    tpu.vector_store %arg10[%c0_29, %c0_30], %61 {strides = array<i32>} : memref<8x128xf32, #tpu.memory_space<vmem>>, vector<8x128xf32>,
    return
  }
  func.func @transform_0(%arg0: i32) -> (i32, i32) {
    %c0_i32 = arith.constant 0 : i32
    %c0_i32_0 = arith.constant 0 : i32
    return %arg0, %c0_i32 : i32, i32
  }
  func.func @transform_1(%arg0: i32) -> (i32, i32) {
    %c0_i32 = arith.constant 0 : i32
    %c0_i32_0 = arith.constant 0 : i32
    %c0_i32_1 = arith.constant 0 : i32
    return %c0_i32, %c0_i32_0 : i32, i32
  }
  func.func @transform_2(%arg0: i32) -> (i32, i32) {
    %c0_i32 = arith.constant 0 : i32
    %c0_i32_0 = arith.constant 0 : i32
    %c0_i32_1 = arith.constant 0 : i32
    return %c0_i32, %c0_i32_0 : i32, i32
  }
  func.func @transform_3(%arg0: i32) -> (i32, i32) {
    %c0_i32 = arith.constant 0 : i32
    %c0_i32_0 = arith.constant 0 : i32
    %c0_i32_1 = arith.constant 0 : i32
    return %c0_i32, %c0_i32_0 : i32, i32
  }
  func.func @transform_4(%arg0: i32) -> (i32, i32) {
    %c0_i32 = arith.constant 0 : i32
    %c0_i32_0 = arith.constant 0 : i32
    %c0_i32_1 = arith.constant 0 : i32
    return %c0_i32, %c0_i32_0 : i32, i32
  }
  func.func @transform_5(%arg0: i32) -> (i32, i32) {
    %c0_i32 = arith.constant 0 : i32
    %c0_i32_0 = arith.constant 0 : i32
    %c0_i32_1 = arith.constant 0 : i32
    return %c0_i32, %c0_i32_0 : i32, i32
  }
  func.func @transform_6(%arg0: i32) -> (i32, i32) {
    %c0_i32 = arith.constant 0 : i32
    %c0_i32_0 = arith.constant 0 : i32
    %c0_i32_1 = arith.constant 0 : i32
    return %c0_i32, %c0_i32_0 : i32, i32
  }
  func.func @transform_7(%arg0: i32) -> (i32, i32) {
    %c0_i32 = arith.constant 0 : i32
    %c0_i32_0 = arith.constant 0 : i32
    return %arg0, %c0_i32 : i32, i32
  }
  func.func @transform_8(%arg0: i32) -> (i32, i32) {
    %c0_i32 = arith.constant 0 : i32
    %c0_i32_0 = arith.constant 0 : i32
    return %arg0, %c0_i32 : i32, i32
  }
  func.func @transform_9(%arg0: i32) -> (i32, i32) {
    %c0_i32 = arith.constant 0 : i32
    %c0_i32_0 = arith.constant 0 : i32
    return %arg0, %c0_i32 : i32, i32
  }
}

</mosaic_0001>

<llo_original>
// kernel: tpu_custom_call.1
$region0: #{tpu_custom_call.1}
  #allocation0 [shape = 'u32[]', space=smem, size = 0x4, offset = 0x4, fixed_abs, tag = 'smem constant byte address 0x4 - core index']
  #allocation1 [shape = 'u32[144,128]{1,0:T(1,128)}', space=vmem, size = 0x12000, scoped, tag = 'internal scratch']
  %s0 = inlined_call_operand.hbm [shape: f32[8,16], index: 0, kind: input, shape index: {}]
  %s1 = inlined_call_operand.hbm [shape: bf16[16,32], index: 1, kind: input, shape index: {}]
  %s2 = inlined_call_operand.vmem [shape: f32[1,32], index: 2, kind: input, shape index: {}]
  %s3 = inlined_call_operand.vmem [shape: bf16[64,128], index: 3, kind: input, shape index: {}]
  %s4 = inlined_call_operand.vmem [shape: f32[1,128], index: 4, kind: input, shape index: {}]
  %s5 = inlined_call_operand.vmem [shape: bf16[32,12], index: 5, kind: input, shape index: {}]
  %s6 = inlined_call_operand.hbm [shape: f32[1,12], index: 6, kind: input, shape index: {}]
  %s7 = inlined_call_operand.vmem [shape: f32[8,32], index: 7, kind: input, shape index: {}]
  %s8 = inlined_call_operand.hbm [shape: f32[8,32], index: 8, kind: input, shape index: {}]
  %s9 = inlined_call_operand.hbm [shape: f32[8,128], index: 9, kind: output, shape index: {}]
  %s10 = sld [smem:[#allocation0]]
  $region62: #{tpu_custom_call.1} parent=0
    _
  %s12 = ssub.s32 1, %s10
  %s13 = scalar_select 0, %s12, %s10
  $region1: #{tpu_custom_call.1} parent=0
    #allocation2 [shape = 'u8[4096]{0}', space=vmem, size = 0x1000, scoped, tag = 'input window, operand 0, single buffered']
    #allocation3 [shape = 's32[1]{0}', space=sflag, size = 0x4, scoped, tag = 'scoped memory for tpu_custom_call.1']
    #allocation4 [shape = 's32[1]{0}', space=sflag, size = 0x4, scoped, tag = 'scoped memory for tpu_custom_call.1']
    #allocation5 [shape = 'u8[4096]{0}', space=vmem, size = 0x1000, scoped, tag = 'input window, operand 1, single buffered']
    #allocation6 [shape = 's32[1]{0}', space=sflag, size = 0x4, scoped, tag = 'scoped memory for tpu_custom_call.1']
    #allocation7 [shape = 'u8[512]{0}', space=vmem, size = 0x400, scoped, tag = 'input window, operand 6, single buffered']
    #allocation8 [shape = 'u8[4096]{0}', space=vmem, size = 0x1000, scoped, tag = 'input window, operand 8, single buffered']
    #allocation9 [shape = 's32[1]{0}', space=sflag, size = 0x4, scoped, tag = 'scoped memory for tpu_custom_call.1']
    #allocation10 [shape = 'u8[4096]{0}', space=vmem, size = 0x1000, scoped, tag = 'output window, operand 0, single buffered']
    %14 = vsyncpa [#allocation3], 0
    %15 = vsyncpa [#allocation6], 0
    %16 = vsyncpa [#allocation9], 0
    %17 = vsyncpa [#allocation4], 0
    // Predicated region
    $region2: #{tpu_custom_call.1} parent=1 // pred_check
      _
    $region3: #{tpu_custom_call.1} parent=1 // pred_check_branch
      %19 = sbr.rel (0) target = $region5
    $region4: #{tpu_custom_call.1} parent=1 // pred_region
      %s21 = ssub.s32 128, 128
      %22 = vsyncadd [#allocation3], %s21
      %s24 = sshll.u32 [#allocation2], 4
      %s25 = int_to_ptr.vmem [resolvable:$true] %s24
      %27 = dma.hbm_to_vmem [thread:$0]  %s0, 128, %s25, [#allocation3]
    $region5: #{tpu_custom_call.1} parent=1 // pred_fallthru
      _
    // Predicated region
    $region6: #{tpu_custom_call.1} parent=1 // pred_check
      _
    $region7: #{tpu_custom_call.1} parent=1 // pred_check_branch
      %29 = sbr.rel (0) target = $region9
    $region8: #{tpu_custom_call.1} parent=1 // pred_region
      %s31 = ssub.s32 128, 128
      %32 = vsyncadd [#allocation6], %s31
      %s33 = sshll.u32 [#allocation5], 4
      %s34 = int_to_ptr.vmem [resolvable:$true] %s33
      %39 = dma.hbm_to_vmem [thread:$0]  %s1, 128, %s34, [#allocation6], 64, 64, 4
    $region9: #{tpu_custom_call.1} parent=1 // pred_fallthru
      _
    // Predicated region
    $region10: #{tpu_custom_call.1} parent=1 // pred_check
      _
    $region11: #{tpu_custom_call.1} parent=1 // pred_check_branch
      %41 = sbr.rel (0) target = $region13
    $region12: #{tpu_custom_call.1} parent=1 // pred_region
      _
    $region13: #{tpu_custom_call.1} parent=1 // pred_fallthru
      _
    // Predicated region
    $region14: #{tpu_custom_call.1} parent=1 // pred_check
      _
    $region15: #{tpu_custom_call.1} parent=1 // pred_check_branch
      %43 = sbr.rel (0) target = $region17
    $region16: #{tpu_custom_call.1} parent=1 // pred_region
      _
    $region17: #{tpu_custom_call.1} parent=1 // pred_fallthru
      _
    // Predicated region
    $region18: #{tpu_custom_call.1} parent=1 // pred_check
      _
    $region19: #{tpu_custom_call.1} parent=1 // pred_check_branch
      %45 = sbr.rel (0) target = $region21
    $region20: #{tpu_custom_call.1} parent=1 // pred_region
      _
    $region21: #{tpu_custom_call.1} parent=1 // pred_fallthru
      _
    // Predicated region
    $region22: #{tpu_custom_call.1} parent=1 // pred_check
      _
    $region23: #{tpu_custom_call.1} parent=1 // pred_check_branch
      %47 = sbr.rel (0) target = $region25
    $region24: #{tpu_custom_call.1} parent=1 // pred_region
      _
    $region25: #{tpu_custom_call.1} parent=1 // pred_fallthru
      _
    // Predicated region
    $region26: #{tpu_custom_call.1} parent=1 // pred_check
      _
    $region27: #{tpu_custom_call.1} parent=1 // pred_check_branch
      %49 = sbr.rel (0) target = $region29
    $region28: #{tpu_custom_call.1} parent=1 // pred_region
      %s51 = ssub.s32 16, 16
      %52 = vsyncadd [#allocation6], %s51
      %s54 = sshll.u32 [#allocation7], 4
      %s55 = int_to_ptr.vmem [resolvable:$true] %s54
      %57 = dma.hbm_to_vmem [thread:$0]  %s6, 16, %s55, [#allocation6]
    $region29: #{tpu_custom_call.1} parent=1 // pred_fallthru
      _
    // Predicated region
    $region30: #{tpu_custom_call.1} parent=1 // pred_check
      _
    $region31: #{tpu_custom_call.1} parent=1 // pred_check_branch
      %59 = sbr.rel (0) target = $region33
    $region32: #{tpu_custom_call.1} parent=1 // pred_region
      _
    $region33: #{tpu_custom_call.1} parent=1 // pred_fallthru
      _
    // Predicated region
    $region34: #{tpu_custom_call.1} parent=1 // pred_check
      _
    $region35: #{tpu_custom_call.1} parent=1 // pred_check_branch
      %61 = sbr.rel (0) target = $region37
    $region36: #{tpu_custom_call.1} parent=1 // pred_region
      %s63 = ssub.s32 128, 128
      %64 = vsyncadd [#allocation9], %s63
      %s66 = sshll.u32 [#allocation8], 4
      %s67 = int_to_ptr.vmem [resolvable:$true] %s66
      %69 = dma.hbm_to_vmem [thread:$0]  %s8, 128, %s67, [#allocation9]
    $region37: #{tpu_custom_call.1} parent=1 // pred_fallthru
      _
    // Predicated region
    $region38: #{tpu_custom_call.1} parent=1 // pred_check
      _
    $region39: #{tpu_custom_call.1} parent=1 // pred_check_branch
      %71 = sbr.rel (0) target = $region41
    $region40: #{tpu_custom_call.1} parent=1 // pred_region
      %72 = dma.done [#allocation3], 128
    $region41: #{tpu_custom_call.1} parent=1 // pred_fallthru
      _
    // Predicated region
    $region42: #{tpu_custom_call.1} parent=1 // pred_check
      _
    $region43: #{tpu_custom_call.1} parent=1 // pred_check_branch
      %74 = sbr.rel (0) target = $region45
    $region44: #{tpu_custom_call.1} parent=1 // pred_region
      %75 = dma.done [#allocation6], 128
    $region45: #{tpu_custom_call.1} parent=1 // pred_fallthru
      _
    // Predicated region
    $region46: #{tpu_custom_call.1} parent=1 // pred_check
      _
    $region47: #{tpu_custom_call.1} parent=1 // pred_check_branch
      %77 = sbr.rel (0) target = $region49
    $region48: #{tpu_custom_call.1} parent=1 // pred_region
      %78 = dma.done [#allocation6], 16
    $region49: #{tpu_custom_call.1} parent=1 // pred_fallthru
      _
    // Predicated region
    $region50: #{tpu_custom_call.1} parent=1 // pred_check
      _
    $region51: #{tpu_custom_call.1} parent=1 // pred_check_branch
      %80 = sbr.rel (0) target = $region53
    $region52: #{tpu_custom_call.1} parent=1 // pred_region
      %81 = dma.done [#allocation9], 128
    $region53: #{tpu_custom_call.1} parent=1 // pred_fallthru
      _
    %v83 = vld [vmem:[#allocation2] sm:$0xff]
    %v84 = vpack.c.bf16 %v83, %v83
    %v85 = vld [vmem:[#allocation5] sm:$0xf]
    %v86 = vld [vmem:[#allocation5 + $0x4] sm:$0xf]
    %v87 = vld [vmem:[%s2] sm:$0x1]
    %v89 = vlaneseq
    %v90 = vshrl.u32 %v89, 7
    %v91 = vsub.s32 0, %v90
    %v92 = vrot.slane %v87, %v91
    %v96 = vunpack.c.l.b16 %v85
    %v97 = vunpack.c.l.b16 %v86
    %v98 = vpack.c.b16 %v97, %v96
    %vm100 = vcmask 130048
    %v102 = vsel %vm100, %v84, 0
    %104 = vmatprep.subr.bf16.mxu0 0
    %105 = vmatpush1.bf16.msra.mxu0 %v98
    %106 = vmatprep.subr.bf16.mxu0 0
    %107 = vmatpush1.bf16.msra.mxu0 0
    %108 = vmatprep.subr.bf16.mxu0 0
    %109 = vmatpush1.bf16.msra.mxu0 0
    %110 = vmatprep.subr.bf16.mxu0 0
    %111 = vmatpush1.bf16.msra.mxu0 0
    %112 = vmatprep.subr.bf16.mxu0 0
    %113 = vmatpush1.bf16.msra.mxu0 0
    %114 = vmatprep.subr.bf16.mxu0 0
    %115 = vmatpush1.bf16.msra.mxu0 0
    %116 = vmatprep.subr.bf16.mxu0 0
    %117 = vmatpush1.bf16.msra.mxu0 0
    %118 = vmatprep.subr.bf16.mxu0 0
    %119 = vmatpush1.bf16.msra.mxu0 0
    %120 = vmatprep.subr.bf16.mxu0 0
    %121 = vmatpush1.bf16.msra.mxu0 0
    %122 = vmatprep.subr.bf16.mxu0 0
    %123 = vmatpush1.bf16.msra.mxu0 0
    %124 = vmatprep.subr.bf16.mxu0 0
    %125 = vmatpush1.bf16.msra.mxu0 0
    %126 = vmatprep.subr.bf16.mxu0 0
    %127 = vmatpush1.bf16.msra.mxu0 0
    %128 = vmatprep.subr.bf16.mxu0 0
    %129 = vmatpush1.bf16.msra.mxu0 0
    %130 = vmatprep.subr.bf16.mxu0 0
    %131 = vmatpush1.bf16.msra.mxu0 0
    %132 = vmatprep.subr.bf16.mxu0 0
    %133 = vmatpush1.bf16.msra.mxu0 0
    %134 = vmatprep.subr.bf16.mxu0 0
    %135 = vmatpush1.bf16.msra.mxu0 0
    %136 = vmatprep.mubr.bf16.mxu0 0
    %137 = vmatmul.mubr.bf16.gmra.mrb[0].mxu0 %v102
    %v138 = vpop.f32.mrb[0].mxu0
    %v139 = vadd.f32 %v92, %v138
    %v140 = vpop.f32.mrb[0].mxu0
    %v141 = vpop.f32.mrb[0].mxu0
    %v142 = vpop.f32.mrb[0].mxu0
    %143 = vdwg.mxu0
    %v144 = vmax.f32 %v139, 0.0
    %v145 = vld [vmem:[%s7] sm:$0xff]
    %147 = vrot.lane.b32.xlu0 %v145, 32
    %v148 = vpop.permute.xlu0 %147
    %vm150 = vcmask 261120
    %v151 = vsel %vm150, %v144, %v148
    %v152 = vpack.c.bf16 %v151, %v151
    %v153 = vld [vmem:[%s3] sm:$0xf]
    %v154 = vld [vmem:[%s3 + $0x4] sm:$0xf]
    %v155 = vld [vmem:[%s3 + $0x8] sm:$0xf]
    %v156 = vld [vmem:[%s3 + $0xc] sm:$0xf]
    %v157 = vld [vmem:[%s3 + $0x10] sm:$0xf]
    %v158 = vld [vmem:[%s3 + $0x14] sm:$0xf]
    %v159 = vld [vmem:[%s3 + $0x18] sm:$0xf]
    %v160 = vld [vmem:[%s3 + $0x1c] sm:$0xf]
    %v161 = vld [vmem:[%s4] sm:$0x1]
    %v163 = vlaneseq
    %v164 = vshrl.u32 %v163, 7
    %v165 = vsub.s32 0, %v164
    %v166 = vrot.slane %v161, %v165
    %v176 = vunpack.c.l.b16 %v153
    %v177 = vunpack.c.l.b16 %v154
    %v178 = vunpack.c.l.b16 %v155
    %v179 = vunpack.c.l.b16 %v156
    %v180 = vunpack.c.l.b16 %v157
    %v181 = vunpack.c.l.b16 %v158
    %v182 = vunpack.c.l.b16 %v159
    %v183 = vunpack.c.l.b16 %v160
    %v184 = vpack.c.b16 %v177, %v176
    %v185 = vpack.c.b16 %v179, %v178
    %v186 = vpack.c.b16 %v181, %v180
    %v187 = vpack.c.b16 %v183, %v182
    %vm192 = vcmask 523264
    %v194 = vsel %vm192, %v152, 0
    %196 = vmatprep.subr.bf16.mxu0 0
    %197 = vmatpush1.bf16.msra.mxu0 %v184
    %198 = vmatprep.subr.bf16.mxu0 0
    %199 = vmatpush1.bf16.msra.mxu0 %v185
    %200 = vmatprep.subr.bf16.mxu0 0
    %201 = vmatpush1.bf16.msra.mxu0 %v186
    %202 = vmatprep.subr.bf16.mxu0 0
    %203 = vmatpush1.bf16.msra.mxu0 %v187
    %204 = vmatprep.subr.bf16.mxu0 0
    %205 = vmatpush1.bf16.msra.mxu0 0
    %206 = vmatprep.subr.bf16.mxu0 0
    %207 = vmatpush1.bf16.msra.mxu0 0
    %208 = vmatprep.subr.bf16.mxu0 0
    %209 = vmatpush1.bf16.msra.mxu0 0
    %210 = vmatprep.subr.bf16.mxu0 0
    %211 = vmatpush1.bf16.msra.mxu0 0
    %212 = vmatprep.subr.bf16.mxu0 0
    %213 = vmatpush1.bf16.msra.mxu0 0
    %214 = vmatprep.subr.bf16.mxu0 0
    %215 = vmatpush1.bf16.msra.mxu0 0
    %216 = vmatprep.subr.bf16.mxu0 0
    %217 = vmatpush1.bf16.msra.mxu0 0
    %218 = vmatprep.subr.bf16.mxu0 0
    %219 = vmatpush1.bf16.msra.mxu0 0
    %220 = vmatprep.subr.bf16.mxu0 0
    %221 = vmatpush1.bf16.msra.mxu0 0
    %222 = vmatprep.subr.bf16.mxu0 0
    %223 = vmatpush1.bf16.msra.mxu0 0
    %224 = vmatprep.subr.bf16.mxu0 0
    %225 = vmatpush1.bf16.msra.mxu0 0
    %226 = vmatprep.subr.bf16.mxu0 0
    %227 = vmatpush1.bf16.msra.mxu0 0
    %228 = vmatprep.mubr.bf16.mxu0 0
    %229 = vmatmul.mubr.bf16.gmra.mrb[0].mxu0 %v194
    %v230 = vpop.f32.mrb[0].mxu0
    %v231 = vadd.f32 %v166, %v230
    %v232 = vpop.f32.mrb[0].mxu0
    %v233 = vpop.f32.mrb[0].mxu0
    %v234 = vpop.f32.mrb[0].mxu0
    %235 = vdwg.mxu0
    %v236 = vsub.f32 0.0, %v231
    %v237 = vmul.f32 %v236, 1.442695
    %v238 = vpow.pop %v237
    %v239 = vadd.f32 %v238, 1.0
    %v240 = vrcp.pop %v239
    %v241 = vmul.f32 1.0, %v240
    %v242 = vtanh.pop %v231
    %v243 = vld [vmem:[#allocation8] sm:$0xff]
    %245 = vrot.lane.b32.xlu0 %v243, 32
    %v246 = vpop.permute.xlu0 %245
    %v248 = vmul.f32 %v241, %v246
    %250 = vrot.lane.b32.xlu0 %v242, 64
    %v251 = vpop.permute.xlu0 %250
    %v253 = vmul.f32 %v241, %v251
    %255 = vrot.lane.b32.xlu0 %v253, 32
    %v256 = vpop.permute.xlu0 %255
    %v258 = vadd.f32 %v248, %v256
    %v259 = vtanh.pop %v258
    %261 = vrot.lane.b32.xlu0 %v259, 64
    %v262 = vpop.permute.xlu0 %261
    %v264 = vmul.f32 %v241, %v262
    %v265 = vpack.c.bf16 %v264, %v264
    %v266 = vld [vmem:[%s5] sm:$0xf]
    %v267 = vld [vmem:[%s5 + $0x4] sm:$0xf]
    %v268 = vld [vmem:[%s5 + $0x8] sm:$0xf]
    %v269 = vld [vmem:[%s5 + $0xc] sm:$0xf]
    %v270 = vld [vmem:[#allocation7] sm:$0x1]
    %v272 = vlaneseq
    %v273 = vshrl.u32 %v272, 7
    %v274 = vsub.s32 0, %v273
    %v275 = vrot.slane %v270, %v274
    %278 = vrot.lane.b32.xlu0 %v265, 32
    %v279 = vpop.permute.xlu0 %278
    %v284 = vunpack.c.l.b16 %v266
    %v285 = vunpack.c.l.b16 %v267
    %v286 = vunpack.c.l.b16 %v268
    %v287 = vunpack.c.l.b16 %v269
    %v288 = vpack.c.b16 %v285, %v284
    %v289 = vpack.c.b16 %v287, %v286
    %v293 = vsel %vm150, %v279, 0
    %295 = vmatprep.subr.bf16.mxu0 0
    %296 = vmatpush1.bf16.msra.mxu0 %v288
    %297 = vmatprep.subr.bf16.mxu0 0
    %298 = vmatpush1.bf16.msra.mxu0 %v289
    %299 = vmatprep.subr.bf16.mxu0 0
    %300 = vmatpush1.bf16.msra.mxu0 0
    %301 = vmatprep.subr.bf16.mxu0 0
    %302 = vmatpush1.bf16.msra.mxu0 0
    %303 = vmatprep.subr.bf16.mxu0 0
    %304 = vmatpush1.bf16.msra.mxu0 0
    %305 = vmatprep.subr.bf16.mxu0 0
    %306 = vmatpush1.bf16.msra.mxu0 0
    %307 = vmatprep.subr.bf16.mxu0 0
    %308 = vmatpush1.bf16.msra.mxu0 0
    %309 = vmatprep.subr.bf16.mxu0 0
    %310 = vmatpush1.bf16.msra.mxu0 0
    %311 = vmatprep.subr.bf16.mxu0 0
    %312 = vmatpush1.bf16.msra.mxu0 0
    %313 = vmatprep.subr.bf16.mxu0 0
    %314 = vmatpush1.bf16.msra.mxu0 0
    %315 = vmatprep.subr.bf16.mxu0 0
    %316 = vmatpush1.bf16.msra.mxu0 0
    %317 = vmatprep.subr.bf16.mxu0 0
    %318 = vmatpush1.bf16.msra.mxu0 0
    %319 = vmatprep.subr.bf16.mxu0 0
    %320 = vmatpush1.bf16.msra.mxu0 0
    %321 = vmatprep.subr.bf16.mxu0 0
    %322 = vmatpush1.bf16.msra.mxu0 0
    %323 = vmatprep.subr.bf16.mxu0 0
    %324 = vmatpush1.bf16.msra.mxu0 0
    %325 = vmatprep.subr.bf16.mxu0 0
    %326 = vmatpush1.bf16.msra.mxu0 0
    %327 = vmatprep.mubr.bf16.mxu0 0
    %328 = vmatmul.mubr.bf16.gmra.mrb[0].mxu0 %v293
    %v329 = vpop.f32.mrb[0].mxu0
    %v330 = vadd.f32 %v275, %v329
    %v331 = vpop.f32.mrb[0].mxu0
    %v332 = vpop.f32.mrb[0].mxu0
    %v333 = vpop.f32.mrb[0].mxu0
    %334 = vdwg.mxu0
    %vm335 = vcmask 48128
    %v336 = vsel %vm335, %v330, -inf
    %337 = vmax.xlane.f32.xlu0 %v336
    %v338 = vpop.xlane.xlu0 %337
    %v339 = vsub.f32 %v330, %v338
    %v340 = vmul.f32 %v339, 1.442695
    %v341 = vpow.pop %v340
    %v342 = vsel %vm335, %v341, 0.0
    %343 = vadd.xlane.f32.xlu0 %v342
    %v344 = vpop.xlane.xlu0 %343
    %v345 = vrcp.pop %v344
    %v346 = vmul.f32 %v341, %v345
    %v347 = vmax.f32 %v346, 1e-06
    %v348 = vmin.f32 %v347, 0.999999
    %350 = vrot.lane.b32.xlu0 %v348, 6
    %v351 = vpop.permute.xlu0 %350
    %v353 = vmul.f32 %v330, %v351
    %355 = vrot.lane.b32.xlu0 %v353, 122
    %v356 = vpop.permute.xlu0 %355
    %v358 = vsel %vm335, %v356, 0.0
    %359 = vadd.xlane.f32.xlu0 %v358
    %v360 = vpop.xlane.xlu0 %359
    %362 = vrot.lane.b32.xlu0 %v264, 45
    %v363 = vpop.permute.xlu0 %362
    %366 = vrot.lane.b32.xlu0 %v258, 13
    %v367 = vpop.permute.xlu0 %366
    %v369 = vsel %vm335, %v348, %v330
    %vm370 = vcmask 97280
    %v371 = vsel %vm370, %v369, %v360
    %vm372 = vcmask 105472
    %v373 = vsel %vm372, %v371, %v363
    %vm374 = vcmask 367616
    %v375 = vsel %vm374, %v373, %v367
    %vm376 = vcmask 629760
    %v377 = vsel %vm376, %v375, 0.0
    %378 = vst [vmem:[#allocation10] sm:$0xff] %v377
    // Predicated region
    $region54: #{tpu_custom_call.1} parent=1 // pred_check
      _
    $region55: #{tpu_custom_call.1} parent=1 // pred_check_branch
      %380 = sbr.rel (0) target = $region57
    $region56: #{tpu_custom_call.1} parent=1 // pred_region
      %s382 = ssub.s32 128, 128
      %383 = vsyncadd [#allocation4], %s382
      %s385 = sshll.u32 [#allocation10], 4
      %s386 = int_to_ptr.vmem [resolvable:$true] %s385
      %388 = dma.vmem_to_hbm [thread:$0]  %s386, 128, %s9, [#allocation4]
    $region57: #{tpu_custom_call.1} parent=1 // pred_fallthru
      _
    // Predicated region
    $region58: #{tpu_custom_call.1} parent=1 // pred_check
      _
    $region59: #{tpu_custom_call.1} parent=1 // pred_check_branch
      %390 = sbr.rel (0) target = $region61
    $region60: #{tpu_custom_call.1} parent=1 // pred_region
      %391 = dma.done [#allocation4], 128
    $region61: #{tpu_custom_call.1} parent=1 // pred_fallthru
      _
    %392 = vsyncpa [#allocation3], 1
    %393 = vsyncpa [#allocation6], 1
    %394 = vsyncpa [#allocation9], 1
    %395 = vsyncpa [#allocation4], 1

</llo_original>
